<compile_context>
chip_gen: v7x
topology: tpu7x:2x2x1
jax: 0.10.0
libtpu: 0.0.40
codegen_flags: <defaults>
</compile_context>

<pallas_src>
import math

import jax
import jax.numpy as jnp
from jax.experimental import pallas as pl
from jax.experimental.pallas import tpu as pltpu


_FLOOR_DEFAULT = 1e-12
_MAX_LANE = 4096  # lane-width cap: a multiple of 128, keeps row-tiling flexible.


def _log_clamp_kernel(x_ref, o_ref, *, floor):
    # torch.clamp(x, min=floor) then log. Compute in f32, cast back.
    xf = x_ref[...].astype(jnp.float32)
    o_ref[...] = jnp.log(jnp.maximum(xf, jnp.float32(floor))).astype(o_ref.dtype)


def _sublane_packing(dtype):
    # Minimum sublane multiple per dtype packing: f32 -> 8, bf16 -> 16, int8/fp8 -> 32.
    return {4: 8, 2: 16, 1: 32}.get(jnp.dtype(dtype).itemsize, 8)


def _choose_lane(total):
    """Largest lane = 128*d (<= _MAX_LANE) that divides `total`, or None."""
    if total % 128 != 0:
        return None
    g = total // 128
    for d in range(min(g, _MAX_LANE // 128), 0, -1):
        if g % d == 0:
            return 128 * d
    return 128


def _pick_max_block_rows(lane, itemsize):
    """Per-generation block-row cap (bigger blocks where VMEM allows)."""
    try:
        kind = jax.devices()[0].device_kind.lower()
    except Exception:
        kind = ""
    vmem_generous = ("v5" in kind) or ("v6" in kind)  # 128 MiB VMEM per TC
    budget_bytes = (8 << 20) if vmem_generous else (4 << 20)  # per block
    return max(8, budget_bytes // (lane * itemsize))


def _grid_params(rows, max_block_rows, sublane):
    """Pick (block_rows, n_blocks): sublane-aligned, VMEM-sized, >=2 steps if possible."""
    if rows <= sublane:
        return rows, 1  # block equals the full (small) sublane dim -> allowed.
    block_rows = min(max_block_rows, rows)
    block_rows = max((block_rows // sublane) * sublane, sublane)
    n_blocks = pl.cdiv(rows, block_rows)
    # v7x has 2 TensorCores; a single-step "parallel" grid leaves one idle.
    if n_blocks < 2 and rows >= 2 * sublane:
        half = (rows + 1) // 2
        block_rows = ((half + sublane - 1) // sublane) * sublane
        n_blocks = pl.cdiv(rows, block_rows)
    return block_rows, n_blocks


def _pallas_log_2d(x2d, floor, block_rows, n_blocks, total_elems, alias_in_out):
    rows, lane = x2d.shape
    itemsize = jnp.dtype(x2d.dtype).itemsize
    block_bytes = block_rows * lane * itemsize
    # in + out, double-buffered, plus headroom; well under every gen's VMEM
    # (max request ~40 MiB on v5e/v6e, ~24 MiB on v7x).
    vmem_limit = min(4 * block_bytes + (8 << 20), 48 << 20)

    kernel = lambda x_ref, o_ref: _log_clamp_kernel(x_ref, o_ref, floor=floor)
    return pl.pallas_call(
        kernel,
        out_shape=jax.ShapeDtypeStruct((rows, lane), x2d.dtype),
        grid_spec=pltpu.PrefetchScalarGridSpec(
            num_scalar_prefetch=0,
            grid=(n_blocks,),
            in_specs=[pl.BlockSpec((block_rows, lane), lambda i: (i, 0))],
            out_specs=pl.BlockSpec((block_rows, lane), lambda i: (i, 0)),
        ),
        compiler_params=pltpu.CompilerParams(
            dimension_semantics=("parallel",),
            vmem_limit_bytes=vmem_limit,
        ),
        cost_estimate=pl.CostEstimate(
            flops=total_elems,                        # one max per element
            transcendentals=total_elems,              # one log per element
            bytes_accessed=2 * total_elems * itemsize,
        ),
        input_output_aliases=({0: 0} if alias_in_out else {}),
    )(x2d)


def log_transform(specgram, floor=_FLOOR_DEFAULT, *, donate_input=False):
    """Pallas TPU implementation of LogTransform.forward.

    specgram: arbitrary-shape float array (e.g. (N, C, H, W)).
    donate_input: set True only when the caller donates `specgram` (enables
      in-place buffer aliasing on the fast path).
    Returns same shape/dtype.
    """
    orig_shape = specgram.shape
    dtype = specgram.dtype
    total = math.prod(orig_shape)
    if total == 0:
        return specgram  # degenerate input: nothing to compute.

    itemsize = jnp.dtype(dtype).itemsize
    sublane = _sublane_packing(dtype)

    lane = _choose_lane(total)
    if lane is not None:
        # Fast path: pure reshape, no padding, no extra HBM copies around the kernel.
        rows = total // lane
        max_block_rows = _pick_max_block_rows(lane, itemsize)
        block_rows, n_blocks = _grid_params(rows, max_block_rows, sublane)
        x2d = specgram.reshape(rows, lane)
        out2d = _pallas_log_2d(x2d, floor, block_rows, n_blocks, total, donate_input)
        return out2d.reshape(orig_shape)

    # Rare fallback: numel not a multiple of 128 -> pad flat copy, slice after.
    tile_elems = sublane * 128
    padded_total = ((total + tile_elems - 1) // tile_elems) * tile_elems
    lane = _choose_lane(padded_total)
    rows = padded_total // lane
    max_block_rows = _pick_max_block_rows(lane, itemsize)
    block_rows, n_blocks = _grid_params(rows, max_block_rows, sublane)
    flat = specgram.reshape(total)
    # Pad with 1.0 (log(1)=0, finite); padded tail is sliced off below.
    flat = jnp.pad(flat, (0, padded_total - total), constant_values=1)
    x2d = flat.reshape(rows, lane)
    out2d = _pallas_log_2d(x2d, floor, block_rows, n_blocks, total, False)
    return out2d.reshape(padded_total)[:total].reshape(orig_shape)


if __name__ == "__main__":
    key = jax.random.PRNGKey(0)

    # Spectrogram-like input: batch=2, channels=4, freq=16, time=16 (fast path).
    x = jax.random.uniform(key, (2, 4, 16, 16), dtype=jnp.float32)
    # Include values below the floor (and zeros) to exercise the clamp.
    x = x.at[0, 0, 0, :].set(0.0)
    x = x.at[1, 2, 3, :].set(1e-15)
    out = jax.block_until_ready(log_transform(x, floor=1e-12))
    ref = jnp.log(jnp.maximum(x, 1e-12))
    assert out.shape == x.shape and out.dtype == x.dtype
    assert jnp.allclose(out, ref, atol=1e-6, rtol=1e-6)

    # Exercise the multi-block / ragged-last-block grid path.
    key2 = jax.random.PRNGKey(0)
    y = jax.random.uniform(key2, (1, 2, 40, 512), dtype=jnp.float32) * 2.0
    out_y = jax.block_until_ready(log_transform(y))
    ref_y = jnp.log(jnp.maximum(y, 1e-12))
    assert jnp.allclose(out_y, ref_y, atol=1e-6, rtol=1e-6)

    # Exercise the rare pad fallback (numel not a multiple of 128).
    key3 = jax.random.PRNGKey(0)
    z = jax.random.uniform(key3, (2, 3, 7, 11), dtype=jnp.float32)
    out_z = jax.block_until_ready(log_transform(z))
    ref_z = jnp.log(jnp.maximum(z, 1e-12))
    assert out_z.shape == z.shape
    assert jnp.allclose(out_z, ref_z, atol=1e-6, rtol=1e-6)

    print("KERNEL_OK")
</pallas_src>

<mosaic_0001>
module attributes {stable_mosaic.version = 11 : i64} {
  func.func @_lambda_(%arg0: i32, %arg1: memref<1x2048xf32, #tpu.memory_space<vmem>>, %arg2: memref<1x2048xf32, #tpu.memory_space<vmem>>) attributes {dimension_semantics = [#tpu.dimension_semantics<parallel>], iteration_bounds = array<i64: 1>, scalar_prefetch = 0 : i64, scratch_operands = 0 : i64, tpu.core_type = #tpu.core_type<tc>, window_params = [{transform_indices = @transform_0, window_bounds = array<i64: 1, 2048>}, {transform_indices = @transform_1, window_bounds = array<i64: 1, 2048>}]} {
    %c0 = arith.constant 0 : index
    %c0_0 = arith.constant 0 : index
    %0 = vector.load %arg1[%c0, %c0_0] : memref<1x2048xf32, #tpu.memory_space<vmem>>, vector<1x2048xf32>
    %cst = arith.constant 9.99999996E-13 : f32
    %1 = vector.broadcast %cst : f32 to vector<1x2048xf32>
    %2 = arith.maximumf %0, %1 : vector<1x2048xf32>
    %3 = math.log %2 : vector<1x2048xf32>
    %c0_1 = arith.constant 0 : index
    %c0_2 = arith.constant 0 : index
    %4 = vector.load %arg2[%c0_1, %c0_2] : memref<1x2048xf32, #tpu.memory_space<vmem>>, vector<1x2048xf32>
    tpu.vector_store %arg2[%c0_1, %c0_2], %3 {strides = array<i32>} : memref<1x2048xf32, #tpu.memory_space<vmem>>, vector<1x2048xf32>,
    return
  }
  func.func @transform_0(%arg0: i32) -> (i32, i32) {
    %c0_i32 = arith.constant 0 : i32
    %c0_i32_0 = arith.constant 0 : i32
    return %arg0, %c0_i32 : i32, i32
  }
  func.func @transform_1(%arg0: i32) -> (i32, i32) {
    %c0_i32 = arith.constant 0 : i32
    %c0_i32_0 = arith.constant 0 : i32
    return %arg0, %c0_i32 : i32, i32
  }
}

</mosaic_0001>

<llo_original>
// kernel: tpu_custom_call.1
$region0: #{tpu_custom_call.1}
  #allocation0 [shape = 'u32[]', space=smem, size = 0x4, offset = 0x4, fixed_abs, tag = 'smem constant byte address 0x4 - core index']
  #allocation1 [shape = 'u32[144,128]{1,0:T(1,128)}', space=vmem, size = 0x12000, scoped, tag = 'internal scratch']
  %s0 = inlined_call_operand.hbm [shape: f32[1,2048], index: 0, kind: input, shape index: {}]
  %s1 = inlined_call_operand.hbm [shape: f32[1,2048], index: 1, kind: output, shape index: {}]
  %s2 = sld [smem:[#allocation0]]
  $region18: #{tpu_custom_call.1} parent=0
    _
  %s4 = ssub.s32 1, %s2
  %s5 = scalar_select 0, %s4, %s2
  $region1: #{tpu_custom_call.1} parent=0
    #allocation2 [shape = 'u8[8192]{0}', space=vmem, size = 0x2000, scoped, tag = 'input window, operand 0, single buffered']
    #allocation3 [shape = 's32[1]{0}', space=sflag, size = 0x4, scoped, tag = 'scoped memory for tpu_custom_call.1']
    #allocation4 [shape = 's32[1]{0}', space=sflag, size = 0x4, scoped, tag = 'scoped memory for tpu_custom_call.1']
    #allocation5 [shape = 'u8[8192]{0}', space=vmem, size = 0x2000, scoped, tag = 'output window, operand 0, single buffered']
    %6 = vsyncpa [#allocation3], 0
    %7 = vsyncpa [#allocation4], 0
    // Predicated region
    $region2: #{tpu_custom_call.1} parent=1 // pred_check
      _
    $region3: #{tpu_custom_call.1} parent=1 // pred_check_branch
      %9 = sbr.rel (0) target = $region5
    $region4: #{tpu_custom_call.1} parent=1 // pred_region
      %s11 = ssub.s32 256, 256
      %12 = vsyncadd [#allocation3], %s11
      %s14 = sshll.u32 [#allocation2], 4
      %s15 = int_to_ptr.vmem [resolvable:$true] %s14
      %17 = dma.hbm_to_vmem [thread:$0]  %s0, 256, %s15, [#allocation3]
    $region5: #{tpu_custom_call.1} parent=1 // pred_fallthru
      _
    // Predicated region
    $region6: #{tpu_custom_call.1} parent=1 // pred_check
      _
    $region7: #{tpu_custom_call.1} parent=1 // pred_check_branch
      %19 = sbr.rel (0) target = $region9
    $region8: #{tpu_custom_call.1} parent=1 // pred_region
      %20 = dma.done [#allocation3], 256
    $region9: #{tpu_custom_call.1} parent=1 // pred_fallthru
      _
    %v21 = vld [vmem:[#allocation2] sm:$0xff]
    %v22 = vld [vmem:[#allocation2 + $0x8] sm:$0xff]
    %v23 = vmax.f32 %v21, 1e-12
    %v24 = vmax.f32 %v22, 1e-12
    %v25 = vlog2.pop %v23
    %v26 = vmul.f32 %v25, 0.6931472
    %v27 = vlog2.pop %v24
    %v28 = vmul.f32 %v27, 0.6931472
    %29 = vst [vmem:[#allocation5] sm:$0xff] %v26
    %30 = vst [vmem:[#allocation5 + $0x8] sm:$0xff] %v28
    // Predicated region
    $region10: #{tpu_custom_call.1} parent=1 // pred_check
      _
    $region11: #{tpu_custom_call.1} parent=1 // pred_check_branch
      %32 = sbr.rel (0) target = $region13
    $region12: #{tpu_custom_call.1} parent=1 // pred_region
      %s34 = ssub.s32 256, 256
      %35 = vsyncadd [#allocation4], %s34
      %s37 = sshll.u32 [#allocation5], 4
      %s38 = int_to_ptr.vmem [resolvable:$true] %s37
      %40 = dma.vmem_to_hbm [thread:$0]  %s38, 256, %s1, [#allocation4]
    $region13: #{tpu_custom_call.1} parent=1 // pred_fallthru
      _
    // Predicated region
    $region14: #{tpu_custom_call.1} parent=1 // pred_check
      _
    $region15: #{tpu_custom_call.1} parent=1 // pred_check_branch
      %42 = sbr.rel (0) target = $region17
    $region16: #{tpu_custom_call.1} parent=1 // pred_region
      %43 = dma.done [#allocation4], 256
    $region17: #{tpu_custom_call.1} parent=1 // pred_fallthru
      _
    %44 = vsyncpa [#allocation3], 1
    %45 = vsyncpa [#allocation4], 1

</llo_original>
